<compile_context>
chip_gen: v6e
topology: v6e:2x2x1
jax: 0.10.0
libtpu: 0.0.40
codegen_flags: <defaults>
</compile_context>

<pallas_src>
import functools

import jax
import jax.numpy as jnp
import numpy as np
from jax import lax
from jax.experimental import pallas as pl
from jax.experimental.pallas import tpu as pltpu


# ----------------------------------------------------------------------------
# Pallas kernel: nb batch elements per grid step, one fused MXU matmul +
# FILM epilogue + spatial max-pool + image_summ Linear.
# ----------------------------------------------------------------------------
def _double_film_kernel(patch_ref, tvec_ref, w_ref, isw_ref, isb_ref,
                        mix_ref, summ_ref, *, nb, HW, DC):
    # patch_ref : (1, nb*HW, 9*Cin)  bf16  im2col'd padded input
    # tvec_ref  : (1, nb, 4, DC)     f32   rows: [1+gamma, beta_img, ttrans, tbias]
    # w_ref     : (9*Cin, 3*DC)      bf16  fused [conv | gbc_gamma | gbc_beta]
    # isw_ref   : (DC, drnn)         f32   image_summ weight
    # isb_ref   : (1, drnn)          f32   image_summ bias
    # mix_ref   : (1, nb, HW, DC)    f32
    # summ_ref  : (1, nb, drnn)      f32   image_summ output
    y = jnp.dot(patch_ref[0], w_ref[...],
                preferred_element_type=jnp.float32)      # (nb*HW, 3*DC), MXU
    y = y.reshape(nb, HW, 3 * DC)                        # split leading sublanes

    acc_c = y[..., :DC]                                  # conv (no bias yet)
    acc_g = y[..., DC:2 * DC]                            # gamma_conv (no bias)
    acc_b = y[..., 2 * DC:]                              # beta_conv (no bias)

    tv = tvec_ref[0]                                     # (nb, 4, DC) f32
    g1 = tv[:, 0:1, :]                                   # 1 + gamma
    bimg = tv[:, 1:2, :]                                 # (1+gamma)*bc + beta
    ttr = tv[:, 2:3, :]                                  # text_trans
    tb = tv[:, 3:4, :]                                   # (1+bg_gamma)*ttrans + bg_beta

    # image_modulated_with_text = relu((1+gamma)*(acc_c+bc) + beta)
    imt = jnp.maximum(g1 * acc_c + bimg, 0.0)
    # text_modulated_with_image = relu((1+acc_g+bg_gamma)*ttrans + acc_b+bg_beta)
    tmi = jnp.maximum(ttr * acc_g + acc_b + tb, 0.0)

    mix = imt + tmi                                      # (nb, HW, DC) f32
    mix_ref[0] = mix

    # Fused image_summ: spatial max-pool (XLU reduce) + tiny f32 matmul.
    pooled = jnp.max(mix, axis=1)                        # (nb, DC)
    summ_ref[0] = jnp.dot(pooled, isw_ref[...],
                          preferred_element_type=jnp.float32) + isb_ref[...]


def _pick_nb(B, HW, KC, DC, target_rows=512, vmem_budget=8 * 1024 * 1024):
    """Batch elements per grid step.

    Aim for M = nb*HW around `target_rows` MXU rows (>=128 fills a full v5e
    MXU pass; larger amortizes the ~0.35 us per-step pipeline overhead on
    v6e/v7x), while keeping the double-buffered per-step VMEM footprint well
    under budget (v7x has only 64 MiB VMEM / 32 MiB default scoped limit).
    nb must divide B.
    """
    # Approx bytes of VMEM per M-row: double-buffered bf16 patches + f32 mix
    # output, plus the f32 matmul result + FILM intermediates.
    bytes_per_row = 2 * (KC * 2 + DC * 4) + 3 * DC * 4 + 2 * DC * 4
    max_rows = max(HW, vmem_budget // max(bytes_per_row, 1))
    want_rows = max(HW, min(target_rows, max_rows))
    nb = max(1, min(B, want_rows // HW))
    while B % nb:                       # nb must divide B
        nb -= 1
    return nb


# ----------------------------------------------------------------------------
# Wrapper: text-side Linears (glue), im2col, pallas_call, NCHW plumbing.
# ----------------------------------------------------------------------------
def double_film_forward(prev, wiki, inv, task, pos, wiki_inv_attn, params):
    del task  # only used for its size in the PyTorch module
    B, Cp, H, W = prev.shape
    Cpos = pos.shape[1]
    Cin = Cp + Cpos
    DC = params["conv_b"].shape[0]
    drnn = params["is_b"].shape[0]
    HW = H * W
    KC = 9 * Cin

    nb = _pick_nb(B, HW, KC, DC)
    ngrid = B // nb

    # --- glue: text concat + small Linears ---------------------------------
    text = jnp.concatenate([wiki, inv, wiki_inv_attn], axis=1)      # (B, 2drnn+2demb)
    gb_trans = text @ params["gbt_w"] + params["gbt_b"]             # (B, 2*DC)
    gamma, beta = jnp.split(gb_trans, 2, axis=1)                    # (B, DC) each
    ttrans = text @ params["tt_w"] + params["tt_b"]                 # (B, DC)

    # Fold the conv / gamma_beta_conv biases into per-batch text vectors:
    #   relu((1+g)*(acc_c+bc)+beta)         = relu(g1*acc_c + beta_img)
    #   relu((1+acc_g+bgG)*tt + acc_b+bgB)  = relu(tt*acc_g + acc_b + tbias)
    bc = params["conv_b"]                                            # (DC,)
    bg_gamma = params["gbc_b"][:DC]
    bg_beta = params["gbc_b"][DC:]
    g1 = 1.0 + gamma                                                 # (B, DC)
    beta_img = g1 * bc + beta                                        # (B, DC)
    tbias = (1.0 + bg_gamma) * ttrans + bg_beta                      # (B, DC)
    tvec = jnp.stack([g1, beta_img, ttrans, tbias], axis=1)          # (B, 4, DC)
    tvec = tvec.reshape(ngrid, nb, 4, DC).astype(jnp.float32)

    # --- glue: NCHW -> NHWC, zero pad, im2col to (ngrid, nb*HW, 9*Cin) -----
    x = jnp.concatenate([prev, pos], axis=1)                         # (B, Cin, H, W)
    x_nhwc = jnp.transpose(x, (0, 2, 3, 1))                          # (B, H, W, Cin)
    x_pad = jnp.pad(x_nhwc, ((0, 0), (1, 1), (1, 1), (0, 0)))        # (B, H+2, W+2, Cin)
    taps = [x_pad[:, dy:dy + H, dx:dx + W, :]
            for dy in range(3) for dx in range(3)]                   # 9 x (B,H,W,Cin)
    patches = jnp.stack(taps, axis=3).reshape(B, HW, KC)             # tap-major, Cin-minor
    patches = patches.reshape(ngrid, nb * HW, KC).astype(jnp.bfloat16)

    # Fused weight: [conv (DC) | gbc gamma (DC) | gbc beta (DC)], tap-major rows.
    w_fused = jnp.concatenate([params["conv_w"], params["gbc_w"]], axis=2)
    w_fused = w_fused.reshape(KC, 3 * DC).astype(jnp.bfloat16)

    is_w = params["is_w"].astype(jnp.float32)                        # (DC, drnn)
    is_b = params["is_b"].reshape(1, drnn).astype(jnp.float32)       # (1, drnn)

    kernel = functools.partial(_double_film_kernel, nb=nb, HW=HW, DC=DC)

    mix_flat, summ = pl.pallas_call(
        kernel,
        out_shape=(
            jax.ShapeDtypeStruct((ngrid, nb, HW, DC), jnp.float32),
            jax.ShapeDtypeStruct((ngrid, nb, drnn), jnp.float32),
        ),
        grid_spec=pltpu.PrefetchScalarGridSpec(
            num_scalar_prefetch=0,
            grid=(ngrid,),
            in_specs=[
                pl.BlockSpec((1, nb * HW, KC), lambda g: (g, 0, 0)),
                pl.BlockSpec((1, nb, 4, DC), lambda g: (g, 0, 0, 0)),
                pl.BlockSpec((KC, 3 * DC), lambda g: (0, 0)),
                pl.BlockSpec((DC, drnn), lambda g: (0, 0)),
                pl.BlockSpec((1, drnn), lambda g: (0, 0)),
            ],
            out_specs=[
                pl.BlockSpec((1, nb, HW, DC), lambda g: (g, 0, 0, 0)),
                pl.BlockSpec((1, nb, drnn), lambda g: (g, 0, 0)),
            ],
        ),
        compiler_params=pltpu.CompilerParams(
            dimension_semantics=("parallel",)),
    )(patches, tvec, w_fused, is_w, is_b)

    # --- glue: NCHW layout plumbing ------------------------------------------
    image_summ = summ.reshape(B, drnn)
    mix = mix_flat.reshape(B, H, W, DC)
    mix = jnp.transpose(mix, (0, 3, 1, 2))                           # back to NCHW
    return mix, image_summ


# ----------------------------------------------------------------------------
# Pure-JAX reference (f32, for sanity check only).
# ----------------------------------------------------------------------------
def double_film_reference(prev, wiki, inv, task, pos, wiki_inv_attn, params):
    del task
    B, Cp, H, W = prev.shape
    Cin = Cp + pos.shape[1]
    DC = params["conv_b"].shape[0]

    text = jnp.concatenate([wiki, inv, wiki_inv_attn], axis=1)
    gb = text @ params["gbt_w"] + params["gbt_b"]
    gamma, beta = jnp.split(gb, 2, axis=1)
    ttrans = text @ params["tt_w"] + params["tt_b"]

    x = jnp.concatenate([prev, pos], axis=1)
    x_nhwc = jnp.transpose(x, (0, 2, 3, 1))
    wc = params["conv_w"].reshape(3, 3, Cin, DC)
    wg = params["gbc_w"].reshape(3, 3, Cin, 2 * DC)
    dn = ("NHWC", "HWIO", "NHWC")
    conv = lax.conv_general_dilated(x_nhwc, wc, (1, 1), "SAME",
                                    dimension_numbers=dn) + params["conv_b"]
    gbc = lax.conv_general_dilated(x_nhwc, wg, (1, 1), "SAME",
                                   dimension_numbers=dn) + params["gbc_b"]
    gamma_conv, beta_conv = gbc[..., :DC], gbc[..., DC:]
    imt = jax.nn.relu((1.0 + gamma[:, None, None, :]) * conv + beta[:, None, None, :])
    tmi = jax.nn.relu((1.0 + gamma_conv) * ttrans[:, None, None, :] + beta_conv)
    mix = imt + tmi
    pooled = mix.max(axis=(1, 2))
    image_summ = pooled @ params["is_w"] + params["is_b"]
    return jnp.transpose(mix, (0, 3, 1, 2)), image_summ


# ----------------------------------------------------------------------------
# Main
# ----------------------------------------------------------------------------
if __name__ == "__main__":
    # Small, consistent shapes.
    B, H, W = 2, 8, 8
    C_prev, C_pos = 4, 2            # prev/pos image channels; conv.in_channels = 6
    Cin = C_prev + C_pos
    drnn, demb, DC = 8, 4, 8        # dchannel = 8
    Dtext = 2 * drnn + 2 * demb     # 24
    T = 3

    key = jax.random.PRNGKey(0)
    ks = jax.random.split(key, 16)

    def u(k, shape, scale):
        return jax.random.uniform(k, shape, jnp.float32, -scale, scale)

    # Deterministic synthetic parameters (PyTorch-equivalent shapes, stored
    # transposed / tap-major so the kernel consumes them directly).
    params = {
        "gbt_w": u(ks[0], (Dtext, 2 * DC), 1.0 / np.sqrt(Dtext)),
        "gbt_b": u(ks[1], (2 * DC,), 1.0 / np.sqrt(Dtext)),
        "tt_w":  u(ks[2], (Dtext, DC), 1.0 / np.sqrt(Dtext)),
        "tt_b":  u(ks[3], (DC,), 1.0 / np.sqrt(Dtext)),
        "conv_w": u(ks[4], (9, Cin, DC), 1.0 / np.sqrt(9 * Cin)),      # self.conv
        "conv_b": u(ks[5], (DC,), 1.0 / np.sqrt(9 * Cin)),
        "gbc_w": u(ks[6], (9, Cin, 2 * DC), 1.0 / np.sqrt(9 * Cin)),   # gamma_beta_conv
        "gbc_b": u(ks[7], (2 * DC,), 1.0 / np.sqrt(9 * Cin)),
        "is_w":  u(ks[8], (DC, drnn), 1.0 / np.sqrt(DC)),              # image_summ
        "is_b":  u(ks[9], (drnn,), 1.0 / np.sqrt(DC)),
    }

    # Deterministic example inputs (NCHW images, PyTorch convention).
    prev = jax.random.normal(ks[10], (B, C_prev, H, W), jnp.float32)
    pos = jax.random.normal(ks[11], (B, C_pos, H, W), jnp.float32)
    wiki = jax.random.normal(ks[12], (B, drnn), jnp.float32)
    inv = jax.random.normal(ks[13], (B, demb), jnp.float32)
    wiki_inv_attn = jax.random.normal(ks[14], (B, drnn + demb), jnp.float32)
    task = jax.random.normal(ks[15], (T, B, 5), jnp.float32)

    mix, image_summ = double_film_forward(prev, wiki, inv, task, pos,
                                          wiki_inv_attn, params)
    jax.block_until_ready((mix, image_summ))

    # Sanity check against a pure-JAX f32 reference (kernel uses bf16 MXU
    # operands with f32 accumulation, hence the 2e-2 tolerance).
    mix_ref, summ_ref = double_film_reference(prev, wiki, inv, task, pos,
                                              wiki_inv_attn, params)
    np.testing.assert_allclose(np.asarray(mix), np.asarray(mix_ref),
                               rtol=2e-2, atol=2e-2)
    np.testing.assert_allclose(np.asarray(image_summ), np.asarray(summ_ref),
                               rtol=2e-2, atol=2e-2)

    assert mix.shape == (B, DC, H, W)
    assert image_summ.shape == (B, drnn)
    print("KERNEL_OK")
</pallas_src>

<mosaic_0001>
module attributes {stable_mosaic.version = 11 : i64} {
  func.func @_double_film_kernel(%arg0: i32, %arg1: memref<1x128x54xbf16, #tpu.memory_space<vmem>>, %arg2: memref<1x2x4x8xf32, #tpu.memory_space<vmem>>, %arg3: memref<54x24xbf16, #tpu.memory_space<vmem>>, %arg4: memref<8x8xf32, #tpu.memory_space<vmem>>, %arg5: memref<1x8xf32, #tpu.memory_space<vmem>>, %arg6: memref<1x2x64x8xf32, #tpu.memory_space<vmem>>, %arg7: memref<1x2x8xf32, #tpu.memory_space<vmem>>) attributes {dimension_semantics = [#tpu.dimension_semantics<parallel>], iteration_bounds = array<i64: 1>, scalar_prefetch = 0 : i64, scratch_operands = 0 : i64, tpu.core_type = #tpu.core_type<tc>, window_params = [{transform_indices = @transform_0, window_bounds = array<i64: 1, 128, 54>}, {transform_indices = @transform_1, window_bounds = array<i64: 1, 2, 4, 8>}, {pipeline_mode = #tpu.pipeline_mode<synchronous>, transform_indices = @transform_2, window_bounds = array<i64: 54, 24>}, {pipeline_mode = #tpu.pipeline_mode<synchronous>, transform_indices = @transform_3, window_bounds = array<i64: 8, 8>}, {pipeline_mode = #tpu.pipeline_mode<synchronous>, transform_indices = @transform_4, window_bounds = array<i64: 1, 8>}, {transform_indices = @transform_5, window_bounds = array<i64: 1, 2, 64, 8>}, {transform_indices = @transform_6, window_bounds = array<i64: 1, 2, 8>}]} {
    %c0 = arith.constant 0 : index
    %c0_0 = arith.constant 0 : index
    %c0_1 = arith.constant 0 : index
    %0 = vector.load %arg1[%c0, %c0_0, %c0_1] : memref<1x128x54xbf16, #tpu.memory_space<vmem>>, vector<1x128x54xbf16>
    %1 = vector.shape_cast %0 : vector<1x128x54xbf16> to vector<128x54xbf16>
    %c0_2 = arith.constant 0 : index
    %c0_3 = arith.constant 0 : index
    %2 = vector.load %arg3[%c0_2, %c0_3] : memref<54x24xbf16, #tpu.memory_space<vmem>>, vector<54x24xbf16>
    %cst = arith.constant dense<0.000000e+00> : vector<128x24xf32>
    %3 = tpu.matmul %1, %2, %cst {dimension_numbers = #tpu.dot_dimension_numbers<[1], [0], [0], [1], [0, 0, 1, 1], [], []>} : vector<128x54xbf16>, vector<54x24xbf16>, vector<128x24xf32> -> vector<128x24xf32>
    %4 = vector.shape_cast %3 : vector<128x24xf32> to vector<2x64x24xf32>
    %5 = vector.extract_strided_slice %4 {offsets = [0, 0, 0], sizes = [2, 64, 8], strides = [1, 1, 1]} : vector<2x64x24xf32> to vector<2x64x8xf32>
    %6 = vector.extract_strided_slice %4 {offsets = [0, 0, 8], sizes = [2, 64, 8], strides = [1, 1, 1]} : vector<2x64x24xf32> to vector<2x64x8xf32>
    %7 = vector.extract_strided_slice %4 {offsets = [0, 0, 16], sizes = [2, 64, 8], strides = [1, 1, 1]} : vector<2x64x24xf32> to vector<2x64x8xf32>
    %c0_4 = arith.constant 0 : index
    %c0_5 = arith.constant 0 : index
    %c0_6 = arith.constant 0 : index
    %c0_7 = arith.constant 0 : index
    %8 = vector.load %arg2[%c0_4, %c0_5, %c0_6, %c0_7] : memref<1x2x4x8xf32, #tpu.memory_space<vmem>>, vector<1x2x4x8xf32>
    %9 = vector.shape_cast %8 : vector<1x2x4x8xf32> to vector<2x4x8xf32>
    %10 = vector.extract_strided_slice %9 {offsets = [0, 0, 0], sizes = [2, 1, 8], strides = [1, 1, 1]} : vector<2x4x8xf32> to vector<2x1x8xf32>
    %11 = vector.extract_strided_slice %9 {offsets = [0, 1, 0], sizes = [2, 1, 8], strides = [1, 1, 1]} : vector<2x4x8xf32> to vector<2x1x8xf32>
    %12 = vector.extract_strided_slice %9 {offsets = [0, 2, 0], sizes = [2, 1, 8], strides = [1, 1, 1]} : vector<2x4x8xf32> to vector<2x1x8xf32>
    %13 = vector.extract_strided_slice %9 {offsets = [0, 3, 0], sizes = [2, 1, 8], strides = [1, 1, 1]} : vector<2x4x8xf32> to vector<2x1x8xf32>
    %14 = vector.broadcast %10 : vector<2x1x8xf32> to vector<2x64x8xf32>
    %15 = arith.mulf %14, %5 : vector<2x64x8xf32>
    %16 = vector.broadcast %11 : vector<2x1x8xf32> to vector<2x64x8xf32>
    %17 = arith.addf %15, %16 : vector<2x64x8xf32>
    %cst_8 = arith.constant 0.000000e+00 : f32
    %18 = vector.broadcast %cst_8 : f32 to vector<2x64x8xf32>
    %19 = arith.maximumf %17, %18 : vector<2x64x8xf32>
    %20 = vector.broadcast %12 : vector<2x1x8xf32> to vector<2x64x8xf32>
    %21 = arith.mulf %20, %6 : vector<2x64x8xf32>
    %22 = arith.addf %21, %7 : vector<2x64x8xf32>
    %23 = vector.broadcast %13 : vector<2x1x8xf32> to vector<2x64x8xf32>
    %24 = arith.addf %22, %23 : vector<2x64x8xf32>
    %cst_9 = arith.constant 0.000000e+00 : f32
    %25 = vector.broadcast %cst_9 : f32 to vector<2x64x8xf32>
    %26 = arith.maximumf %24, %25 : vector<2x64x8xf32>
    %27 = arith.addf %19, %26 : vector<2x64x8xf32>
    %c0_10 = arith.constant 0 : index
    %c0_11 = arith.constant 0 : index
    %c0_12 = arith.constant 0 : index
    %c0_13 = arith.constant 0 : index
    %28 = vector.load %arg6[%c0_10, %c0_11, %c0_12, %c0_13] : memref<1x2x64x8xf32, #tpu.memory_space<vmem>>, vector<1x2x64x8xf32>
    %29 = vector.shape_cast %28 : vector<1x2x64x8xf32> to vector<2x64x8xf32>
    %30 = vector.shape_cast %27 : vector<2x64x8xf32> to vector<1x2x64x8xf32>
    tpu.vector_store %arg6[%c0_10, %c0_11, %c0_12, %c0_13], %30 {strides = array<i32>} : memref<1x2x64x8xf32, #tpu.memory_space<vmem>>, vector<1x2x64x8xf32>,
    %cst_14 = arith.constant dense<0xFF800000> : vector<2x8xf32>
    %31 = vector.multi_reduction <maximumf>, %27, %cst_14 [1] : vector<2x64x8xf32> to vector<2x8xf32>
    %c0_15 = arith.constant 0 : index
    %c0_16 = arith.constant 0 : index
    %32 = vector.load %arg4[%c0_15, %c0_16] : memref<8x8xf32, #tpu.memory_space<vmem>>, vector<8x8xf32>
    %cst_17 = arith.constant dense<0.000000e+00> : vector<2x8xf32>
    %33 = tpu.matmul %31, %32, %cst_17 {dimension_numbers = #tpu.dot_dimension_numbers<[1], [0], [0], [1], [0, 0, 1, 1], [], []>} : vector<2x8xf32>, vector<8x8xf32>, vector<2x8xf32> -> vector<2x8xf32>
    %c0_18 = arith.constant 0 : index
    %c0_19 = arith.constant 0 : index
    %34 = vector.load %arg5[%c0_18, %c0_19] : memref<1x8xf32, #tpu.memory_space<vmem>>, vector<1x8xf32>
    %35 = vector.broadcast %34 : vector<1x8xf32> to vector<2x8xf32>
    %36 = arith.addf %33, %35 : vector<2x8xf32>
    %c0_20 = arith.constant 0 : index
    %c0_21 = arith.constant 0 : index
    %c0_22 = arith.constant 0 : index
    %37 = vector.load %arg7[%c0_20, %c0_21, %c0_22] : memref<1x2x8xf32, #tpu.memory_space<vmem>>, vector<1x2x8xf32>
    %38 = vector.shape_cast %37 : vector<1x2x8xf32> to vector<2x8xf32>
    %39 = vector.shape_cast %36 : vector<2x8xf32> to vector<1x2x8xf32>
    tpu.vector_store %arg7[%c0_20, %c0_21, %c0_22], %39 {strides = array<i32>} : memref<1x2x8xf32, #tpu.memory_space<vmem>>, vector<1x2x8xf32>,
    return
  }
  func.func @transform_0(%arg0: i32) -> (i32, i32, i32) {
    %c0_i32 = arith.constant 0 : i32
    %c0_i32_0 = arith.constant 0 : i32
    %c0_i32_1 = arith.constant 0 : i32
    return %arg0, %c0_i32, %c0_i32_0 : i32, i32, i32
  }
  func.func @transform_1(%arg0: i32) -> (i32, i32, i32, i32) {
    %c0_i32 = arith.constant 0 : i32
    %c0_i32_0 = arith.constant 0 : i32
    %c0_i32_1 = arith.constant 0 : i32
    %c0_i32_2 = arith.constant 0 : i32
    return %arg0, %c0_i32, %c0_i32_0, %c0_i32_1 : i32, i32, i32, i32
  }
  func.func @transform_2(%arg0: i32) -> (i32, i32) {
    %c0_i32 = arith.constant 0 : i32
    %c0_i32_0 = arith.constant 0 : i32
    %c0_i32_1 = arith.constant 0 : i32
    return %c0_i32, %c0_i32_0 : i32, i32
  }
  func.func @transform_3(%arg0: i32) -> (i32, i32) {
    %c0_i32 = arith.constant 0 : i32
    %c0_i32_0 = arith.constant 0 : i32
    %c0_i32_1 = arith.constant 0 : i32
    return %c0_i32, %c0_i32_0 : i32, i32
  }
  func.func @transform_4(%arg0: i32) -> (i32, i32) {
    %c0_i32 = arith.constant 0 : i32
    %c0_i32_0 = arith.constant 0 : i32
    %c0_i32_1 = arith.constant 0 : i32
    return %c0_i32, %c0_i32_0 : i32, i32
  }
  func.func @transform_5(%arg0: i32) -> (i32, i32, i32, i32) {
    %c0_i32 = arith.constant 0 : i32
    %c0_i32_0 = arith.constant 0 : i32
    %c0_i32_1 = arith.constant 0 : i32
    %c0_i32_2 = arith.constant 0 : i32
    return %arg0, %c0_i32, %c0_i32_0, %c0_i32_1 : i32, i32, i32, i32
  }
  func.func @transform_6(%arg0: i32) -> (i32, i32, i32) {
    %c0_i32 = arith.constant 0 : i32
    %c0_i32_0 = arith.constant 0 : i32
    %c0_i32_1 = arith.constant 0 : i32
    return %arg0, %c0_i32, %c0_i32_0 : i32, i32, i32
  }
}

</mosaic_0001>

<llo_original>
// kernel: tpu_custom_call.1
$region0: #{tpu_custom_call.1}
  #allocation0 [shape = 'u32[]', space=smem, size = 0x4, offset = 0x4, fixed_abs, tag = 'smem constant byte address 0x4 - core index']
  #allocation1 [shape = 'u32[144,128]{1,0:T(1,128)}', space=vmem, size = 0x12000, scoped, tag = 'internal scratch']
  %s0 = inlined_call_operand.vmem [shape: bf16[1,128,54], index: 0, kind: input, shape index: {}]
  %s1 = inlined_call_operand.vmem [shape: f32[1,2,4,8], index: 1, kind: input, shape index: {}]
  %s2 = inlined_call_operand.vmem [shape: bf16[54,24], index: 2, kind: input, shape index: {}]
  %s3 = inlined_call_operand.vmem [shape: f32[8,8], index: 3, kind: input, shape index: {}]
  %s4 = inlined_call_operand.vmem [shape: f32[1,8], index: 4, kind: input, shape index: {}]
  %s5 = inlined_call_operand.vmem [shape: f32[1,2,64,8], index: 5, kind: output, shape index: {0}]
  %s6 = inlined_call_operand.hbm [shape: f32[1,2,8], index: 6, kind: output, shape index: {1}]
  %7 = xla_tuple %s5, %s6
  %s8 = sld [smem:[#allocation0]]
  $region38: #{tpu_custom_call.1} parent=0
    _
  %s10 = ssub.s32 1, %s8
  %s11 = scalar_select 0, %s10, %s8
  $region1: #{tpu_custom_call.1} parent=0
    #allocation2 [shape = 'u8[1024]{0}', space=vmem, size = 0x400, scoped, tag = 'output window, operand 1, single buffered']
    #allocation3 [shape = 's32[1]{0}', space=sflag, size = 0x4, scoped, tag = 'scoped memory for tpu_custom_call.1']
    %12 = vsyncpa [#allocation3], 0
    // Predicated region
    $region2: #{tpu_custom_call.1} parent=1 // pred_check
      _
    $region3: #{tpu_custom_call.1} parent=1 // pred_check_branch
      %14 = sbr.rel (0) target = $region5
    $region4: #{tpu_custom_call.1} parent=1 // pred_region
      _
    $region5: #{tpu_custom_call.1} parent=1 // pred_fallthru
      _
    // Predicated region
    $region6: #{tpu_custom_call.1} parent=1 // pred_check
      _
    $region7: #{tpu_custom_call.1} parent=1 // pred_check_branch
      %16 = sbr.rel (0) target = $region9
    $region8: #{tpu_custom_call.1} parent=1 // pred_region
      _
    $region9: #{tpu_custom_call.1} parent=1 // pred_fallthru
      _
    // Predicated region
    $region10: #{tpu_custom_call.1} parent=1 // pred_check
      _
    $region11: #{tpu_custom_call.1} parent=1 // pred_check_branch
      %18 = sbr.rel (0) target = $region13
    $region12: #{tpu_custom_call.1} parent=1 // pred_region
      _
    $region13: #{tpu_custom_call.1} parent=1 // pred_fallthru
      _
    // Predicated region
    $region14: #{tpu_custom_call.1} parent=1 // pred_check
      _
    $region15: #{tpu_custom_call.1} parent=1 // pred_check_branch
      %20 = sbr.rel (0) target = $region17
    $region16: #{tpu_custom_call.1} parent=1 // pred_region
      _
    $region17: #{tpu_custom_call.1} parent=1 // pred_fallthru
      _
    // Predicated region
    $region18: #{tpu_custom_call.1} parent=1 // pred_check
      _
    $region19: #{tpu_custom_call.1} parent=1 // pred_check_branch
      %22 = sbr.rel (0) target = $region21
    $region20: #{tpu_custom_call.1} parent=1 // pred_region
      _
    $region21: #{tpu_custom_call.1} parent=1 // pred_fallthru
      _
    %v24 = vld [vmem:[%s0] sm:$0xf]
    %v25 = vld [vmem:[%s0 + $0x4] sm:$0xf]
    %v26 = vld [vmem:[%s0 + $0x8] sm:$0xf]
    %v27 = vld [vmem:[%s0 + $0xc] sm:$0xf]
    %v28 = vld [vmem:[%s0 + $0x10] sm:$0xf]
    %v29 = vld [vmem:[%s0 + $0x14] sm:$0xf]
    %v30 = vld [vmem:[%s0 + $0x18] sm:$0xf]
    %v31 = vld [vmem:[%s0 + $0x1c] sm:$0xf]
    %v32 = vld [vmem:[%s0 + $0x20] sm:$0xf]
    %v33 = vld [vmem:[%s0 + $0x24] sm:$0xf]
    %v34 = vld [vmem:[%s0 + $0x28] sm:$0xf]
    %v35 = vld [vmem:[%s0 + $0x2c] sm:$0xf]
    %v36 = vld [vmem:[%s0 + $0x30] sm:$0xf]
    %v37 = vld [vmem:[%s0 + $0x34] sm:$0xf]
    %v38 = vld [vmem:[%s0 + $0x38] sm:$0xf]
    %v39 = vld [vmem:[%s0 + $0x3c] sm:$0xf]
    %v40 = vld [vmem:[%s2] sm:$0xf]
    %v41 = vld [vmem:[%s2 + $0x4] sm:$0xf]
    %v42 = vld [vmem:[%s2 + $0x8] sm:$0xf]
    %v43 = vld [vmem:[%s2 + $0xc] sm:$0xf]
    %v44 = vld [vmem:[%s2 + $0x10] sm:$0xf]
    %v45 = vld [vmem:[%s2 + $0x14] sm:$0xf]
    %v46 = vld [vmem:[%s2 + $0x18] sm:$0x7]
    %v63 = vunpack.c.l.b16 %v24
    %v64 = vunpack.c.l.b16 %v25
    %v65 = vunpack.c.l.b16 %v26
    %v66 = vunpack.c.l.b16 %v27
    %v67 = vunpack.c.l.b16 %v28
    %v68 = vunpack.c.l.b16 %v29
    %v69 = vunpack.c.l.b16 %v30
    %v70 = vunpack.c.l.b16 %v31
    %v71 = vunpack.c.l.b16 %v32
    %v72 = vunpack.c.l.b16 %v33
    %v73 = vunpack.c.l.b16 %v34
    %v74 = vunpack.c.l.b16 %v35
    %v75 = vunpack.c.l.b16 %v36
    %v76 = vunpack.c.l.b16 %v37
    %v77 = vunpack.c.l.b16 %v38
    %v78 = vunpack.c.l.b16 %v39
    %v79 = vpack.c.b16 %v64, %v63
    %v80 = vpack.c.b16 %v66, %v65
    %v81 = vpack.c.b16 %v68, %v67
    %v82 = vpack.c.b16 %v70, %v69
    %v83 = vpack.c.b16 %v72, %v71
    %v84 = vpack.c.b16 %v74, %v73
    %v85 = vpack.c.b16 %v76, %v75
    %v86 = vpack.c.b16 %v78, %v77
    %v94 = vunpack.c.l.b16 %v40
    %v95 = vunpack.c.l.b16 %v41
    %v96 = vunpack.c.l.b16 %v42
    %v97 = vunpack.c.l.b16 %v43
    %v98 = vunpack.c.l.b16 %v44
    %v99 = vunpack.c.l.b16 %v45
    %v100 = vunpack.c.l.b16 %v46
    %v101 = vpack.c.b16 %v95, %v94
    %v102 = vpack.c.b16 %v97, %v96
    %v103 = vpack.c.b16 %v99, %v98
    %v104 = vpack.c.b16 %v100, %v100
    %vm108 = vcmask 441344
    %v110 = vsel %vm108, %v79, 0
    %v113 = vsel %vm108, %v80, 0
    %v116 = vsel %vm108, %v81, 0
    %v119 = vsel %vm108, %v82, 0
    %v122 = vsel %vm108, %v83, 0
    %v125 = vsel %vm108, %v84, 0
    %v128 = vsel %vm108, %v85, 0
    %v131 = vsel %vm108, %v86, 0
    %vm133 = vcmask 1042432
    %v135 = vsel %vm133, %v104, 0
    %137 = vmatprep.subr.bf16.mxu0 0
    %138 = vmatpush1.bf16.msra.mxu0 0
    %139 = vmatprep.subr.bf16.mxu0 0
    %140 = vmatpush1.bf16.msra.mxu0 0
    %141 = vmatprep.subr.bf16.mxu0 0
    %142 = vmatpush1.bf16.msra.mxu0 0
    %143 = vmatprep.subr.bf16.mxu0 0
    %144 = vmatpush1.bf16.msra.mxu0 0
    %145 = vmatprep.subr.bf16.mxu0 0
    %146 = vmatpush1.bf16.msra.mxu0 %v135
    %147 = vmatprep.subr.bf16.mxu0 0
    %148 = vmatpush1.bf16.msra.mxu0 %v103
    %149 = vmatprep.subr.bf16.mxu0 0
    %150 = vmatpush1.bf16.msra.mxu0 %v102
    %151 = vmatprep.subr.bf16.mxu0 0
    %152 = vmatpush1.bf16.msra.mxu0 %v101
    %153 = vmatprep.subr.bf16.mxu0 0
    %154 = vmatpush2.bf16.msra.mxu0 0
    %155 = vmatprep.subr.bf16.mxu0 0
    %156 = vmatpush2.bf16.msra.mxu0 0
    %157 = vmatprep.subr.bf16.mxu0 0
    %158 = vmatpush2.bf16.msra.mxu0 0
    %159 = vmatprep.subr.bf16.mxu0 0
    %160 = vmatpush2.bf16.msra.mxu0 0
    %161 = vmatprep.subr.bf16.mxu0 0
    %162 = vmatpush2.bf16.msra.mxu0 0
    %163 = vmatprep.subr.bf16.mxu0 0
    %164 = vmatpush2.bf16.msra.mxu0 0
    %165 = vmatprep.subr.bf16.mxu0 0
    %166 = vmatpush2.bf16.msra.mxu0 0
    %167 = vmatprep.subr.bf16.mxu0 0
    %168 = vmatpush2.bf16.msra.mxu0 0
    %169 = vmatprep.mubr.bf16.mxu0 0
    %170 = vmatmul.mubr.bf16.gmra.mxu0 %v110
    %v171 = vpop.f32.mrf.mxu0
    %v172 = vadd.f32 0.0, %v171
    %v173 = vpop.f32.mrf.mxu0
    %v174 = vpop.f32.mrf.mxu0
    %v175 = vadd.f32 0.0, %v174
    %v176 = vpop.f32.mrf.mxu0
    %177 = vmatprep.mubr.bf16.mxu0 0
    %178 = vmatmul.mubr.bf16.gmra.mxu0 %v113
    %v179 = vpop.f32.mrf.mxu0
    %v180 = vadd.f32 0.0, %v179
    %v181 = vpop.f32.mrf.mxu0
    %v182 = vpop.f32.mrf.mxu0
    %v183 = vadd.f32 0.0, %v182
    %v184 = vpop.f32.mrf.mxu0
    %185 = vmatprep.mubr.bf16.mxu0 0
    %186 = vmatmul.mubr.bf16.gmra.mxu0 %v116
    %v187 = vpop.f32.mrf.mxu0
    %v188 = vadd.f32 0.0, %v187
    %v189 = vpop.f32.mrf.mxu0
    %v190 = vpop.f32.mrf.mxu0
    %v191 = vadd.f32 0.0, %v190
    %v192 = vpop.f32.mrf.mxu0
    %193 = vmatprep.mubr.bf16.mxu0 0
    %194 = vmatmul.mubr.bf16.gmra.mxu0 %v119
    %v195 = vpop.f32.mrf.mxu0
    %v196 = vadd.f32 0.0, %v195
    %v197 = vpop.f32.mrf.mxu0
    %v198 = vpop.f32.mrf.mxu0
    %v199 = vadd.f32 0.0, %v198
    %v200 = vpop.f32.mrf.mxu0
    %201 = vmatprep.mubr.bf16.mxu0 0
    %202 = vmatmul.mubr.bf16.gmra.mxu0 %v122
    %v203 = vpop.f32.mrf.mxu0
    %v204 = vadd.f32 0.0, %v203
    %v205 = vpop.f32.mrf.mxu0
    %v206 = vpop.f32.mrf.mxu0
    %v207 = vadd.f32 0.0, %v206
    %v208 = vpop.f32.mrf.mxu0
    %209 = vmatprep.mubr.bf16.mxu0 0
    %210 = vmatmul.mubr.bf16.gmra.mxu0 %v125
    %v211 = vpop.f32.mrf.mxu0
    %v212 = vadd.f32 0.0, %v211
    %v213 = vpop.f32.mrf.mxu0
    %v214 = vpop.f32.mrf.mxu0
    %v215 = vadd.f32 0.0, %v214
    %v216 = vpop.f32.mrf.mxu0
    %217 = vmatprep.mubr.bf16.mxu0 0
    %218 = vmatmul.mubr.bf16.gmra.mxu0 %v128
    %v219 = vpop.f32.mrf.mxu0
    %v220 = vadd.f32 0.0, %v219
    %v221 = vpop.f32.mrf.mxu0
    %v222 = vpop.f32.mrf.mxu0
    %v223 = vadd.f32 0.0, %v222
    %v224 = vpop.f32.mrf.mxu0
    %225 = vmatprep.mubr.bf16.mxu0 0
    %226 = vmatmul.mubr.bf16.gmra.mxu0 %v131
    %v227 = vpop.f32.mrf.mxu0
    %v228 = vadd.f32 0.0, %v227
    %v229 = vpop.f32.mrf.mxu0
    %v230 = vpop.f32.mrf.mxu0
    %v231 = vadd.f32 0.0, %v230
    %v232 = vpop.f32.mrf.mxu0
    %233 = vdwg.mxu0
    %v234 = vld [vmem:[%s1] sm:$0xf]
    %v235 = vld [vmem:[%s1 + $0x4] sm:$0xf]
    %v236 = vlaneseq
    %v237 = vshrl.u32 %v236, 7
    %v238 = vsub.s32 0, %v237
    %v239 = vrot.slane %v234, %v238
    %v240 = vlaneseq
    %v241 = vshrl.u32 %v240, 7
    %v242 = vsub.s32 0, %v241
    %v243 = vrot.slane %v235, %v242
    %v244 = vmul.f32 %v239, %v172
    %v245 = vmul.f32 %v239, %v175
    %v246 = vmul.f32 %v239, %v180
    %v247 = vmul.f32 %v239, %v183
    %v248 = vmul.f32 %v239, %v188
    %v249 = vmul.f32 %v239, %v191
    %v250 = vmul.f32 %v239, %v196
    %v251 = vmul.f32 %v239, %v199
    %v252 = vmul.f32 %v243, %v204
    %v253 = vmul.f32 %v243, %v207
    %v254 = vmul.f32 %v243, %v212
    %v255 = vmul.f32 %v243, %v215
    %v256 = vmul.f32 %v243, %v220
    %v257 = vmul.f32 %v243, %v223
    %v258 = vmul.f32 %v243, %v228
    %v259 = vmul.f32 %v243, %v231
    %v260 = vlaneseq
    %v261 = vshrl.u32 %v260, 7
    %v262 = vsub.s32 1, %v261
    %v263 = vrot.slane %v234, %v262
    %v264 = vlaneseq
    %v265 = vshrl.u32 %v264, 7
    %v266 = vsub.s32 1, %v265
    %v267 = vrot.slane %v235, %v266
    %v268 = vadd.f32 %v244, %v263
    %v269 = vadd.f32 %v245, %v263
    %v270 = vadd.f32 %v246, %v263
    %v271 = vadd.f32 %v247, %v263
    %v272 = vadd.f32 %v248, %v263
    %v273 = vadd.f32 %v249, %v263
    %v274 = vadd.f32 %v250, %v263
    %v275 = vadd.f32 %v251, %v263
    %v276 = vadd.f32 %v252, %v267
    %v277 = vadd.f32 %v253, %v267
    %v278 = vadd.f32 %v254, %v267
    %v279 = vadd.f32 %v255, %v267
    %v280 = vadd.f32 %v256, %v267
    %v281 = vadd.f32 %v257, %v267
    %v282 = vadd.f32 %v258, %v267
    %v283 = vadd.f32 %v259, %v267
    %v284 = vmax.f32 %v268, 0.0
    %v285 = vmax.f32 %v269, 0.0
    %v286 = vmax.f32 %v270, 0.0
    %v287 = vmax.f32 %v271, 0.0
    %v288 = vmax.f32 %v272, 0.0
    %v289 = vmax.f32 %v273, 0.0
    %v290 = vmax.f32 %v274, 0.0
    %v291 = vmax.f32 %v275, 0.0
    %v292 = vmax.f32 %v276, 0.0
    %v293 = vmax.f32 %v277, 0.0
    %v294 = vmax.f32 %v278, 0.0
    %v295 = vmax.f32 %v279, 0.0
    %v296 = vmax.f32 %v280, 0.0
    %v297 = vmax.f32 %v281, 0.0
    %v298 = vmax.f32 %v282, 0.0
    %v299 = vmax.f32 %v283, 0.0
    %v300 = vlaneseq
    %v301 = vshrl.u32 %v300, 7
    %v302 = vsub.s32 2, %v301
    %v303 = vrot.slane %v234, %v302
    %v304 = vlaneseq
    %v305 = vshrl.u32 %v304, 7
    %v306 = vsub.s32 2, %v305
    %v307 = vrot.slane %v235, %v306
    %324 = vrot.lane.b32.xlu0 %v172, 120
    %v325 = vpop.permute.xlu0 %324
    %326 = vrot.lane.b32.xlu0 %v175, 120
    %v327 = vpop.permute.xlu0 %326
    %328 = vrot.lane.b32.xlu0 %v180, 120
    %v329 = vpop.permute.xlu0 %328
    %330 = vrot.lane.b32.xlu0 %v183, 120
    %v331 = vpop.permute.xlu0 %330
    %332 = vrot.lane.b32.xlu0 %v188, 120
    %v333 = vpop.permute.xlu0 %332
    %334 = vrot.lane.b32.xlu0 %v191, 120
    %v335 = vpop.permute.xlu0 %334
    %336 = vrot.lane.b32.xlu0 %v196, 120
    %v337 = vpop.permute.xlu0 %336
    %338 = vrot.lane.b32.xlu0 %v199, 120
    %v339 = vpop.permute.xlu0 %338
    %340 = vrot.lane.b32.xlu0 %v204, 120
    %v341 = vpop.permute.xlu0 %340
    %342 = vrot.lane.b32.xlu0 %v207, 120
    %v343 = vpop.permute.xlu0 %342
    %344 = vrot.lane.b32.xlu0 %v212, 120
    %v345 = vpop.permute.xlu0 %344
    %346 = vrot.lane.b32.xlu0 %v215, 120
    %v347 = vpop.permute.xlu0 %346
    %348 = vrot.lane.b32.xlu0 %v220, 120
    %v349 = vpop.permute.xlu0 %348
    %350 = vrot.lane.b32.xlu0 %v223, 120
    %v351 = vpop.permute.xlu0 %350
    %352 = vrot.lane.b32.xlu0 %v228, 120
    %v353 = vpop.permute.xlu0 %352
    %354 = vrot.lane.b32.xlu0 %v231, 120
    %v355 = vpop.permute.xlu0 %354
    %v372 = vmul.f32 %v303, %v325
    %v373 = vmul.f32 %v303, %v327
    %v374 = vmul.f32 %v303, %v329
    %v375 = vmul.f32 %v303, %v331
    %v376 = vmul.f32 %v303, %v333
    %v377 = vmul.f32 %v303, %v335
    %v378 = vmul.f32 %v303, %v337
    %v379 = vmul.f32 %v303, %v339
    %v380 = vmul.f32 %v307, %v341
    %v381 = vmul.f32 %v307, %v343
    %v382 = vmul.f32 %v307, %v345
    %v383 = vmul.f32 %v307, %v347
    %v384 = vmul.f32 %v307, %v349
    %v385 = vmul.f32 %v307, %v351
    %v386 = vmul.f32 %v307, %v353
    %v387 = vmul.f32 %v307, %v355
    %388 = vrot.lane.b32.xlu0 %v172, 112
    %v389 = vpop.permute.xlu0 %388
    %390 = vrot.lane.b32.xlu0 %v175, 112
    %v391 = vpop.permute.xlu0 %390
    %392 = vrot.lane.b32.xlu0 %v180, 112
    %v393 = vpop.permute.xlu0 %392
    %394 = vrot.lane.b32.xlu0 %v183, 112
    %v395 = vpop.permute.xlu0 %394
    %396 = vrot.lane.b32.xlu0 %v188, 112
    %v397 = vpop.permute.xlu0 %396
    %398 = vrot.lane.b32.xlu0 %v191, 112
    %v399 = vpop.permute.xlu0 %398
    %400 = vrot.lane.b32.xlu0 %v196, 112
    %v401 = vpop.permute.xlu0 %400
    %402 = vrot.lane.b32.xlu0 %v199, 112
    %v403 = vpop.permute.xlu0 %402
    %404 = vrot.lane.b32.xlu0 %v204, 112
    %v405 = vpop.permute.xlu0 %404
    %406 = vrot.lane.b32.xlu0 %v207, 112
    %v407 = vpop.permute.xlu0 %406
    %408 = vrot.lane.b32.xlu0 %v212, 112
    %v409 = vpop.permute.xlu0 %408
    %410 = vrot.lane.b32.xlu0 %v215, 112
    %v411 = vpop.permute.xlu0 %410
    %412 = vrot.lane.b32.xlu0 %v220, 112
    %v413 = vpop.permute.xlu0 %412
    %414 = vrot.lane.b32.xlu0 %v223, 112
    %v415 = vpop.permute.xlu0 %414
    %416 = vrot.lane.b32.xlu0 %v228, 112
    %v417 = vpop.permute.xlu0 %416
    %418 = vrot.lane.b32.xlu0 %v231, 112
    %v419 = vpop.permute.xlu0 %418
    %v436 = vadd.f32 %v372, %v389
    %v437 = vadd.f32 %v373, %v391
    %v438 = vadd.f32 %v374, %v393
    %v439 = vadd.f32 %v375, %v395
    %v440 = vadd.f32 %v376, %v397
    %v441 = vadd.f32 %v377, %v399
    %v442 = vadd.f32 %v378, %v401
    %v443 = vadd.f32 %v379, %v403
    %v444 = vadd.f32 %v380, %v405
    %v445 = vadd.f32 %v381, %v407
    %v446 = vadd.f32 %v382, %v409
    %v447 = vadd.f32 %v383, %v411
    %v448 = vadd.f32 %v384, %v413
    %v449 = vadd.f32 %v385, %v415
    %v450 = vadd.f32 %v386, %v417
    %v451 = vadd.f32 %v387, %v419
    %v452 = vlaneseq
    %v453 = vshrl.u32 %v452, 7
    %v454 = vsub.s32 3, %v453
    %v455 = vrot.slane %v234, %v454
    %v456 = vlaneseq
    %v457 = vshrl.u32 %v456, 7
    %v458 = vsub.s32 3, %v457
    %v459 = vrot.slane %v235, %v458
    %v460 = vadd.f32 %v436, %v455
    %v461 = vadd.f32 %v437, %v455
    %v462 = vadd.f32 %v438, %v455
    %v463 = vadd.f32 %v439, %v455
    %v464 = vadd.f32 %v440, %v455
    %v465 = vadd.f32 %v441, %v455
    %v466 = vadd.f32 %v442, %v455
    %v467 = vadd.f32 %v443, %v455
    %v468 = vadd.f32 %v444, %v459
    %v469 = vadd.f32 %v445, %v459
    %v470 = vadd.f32 %v446, %v459
    %v471 = vadd.f32 %v447, %v459
    %v472 = vadd.f32 %v448, %v459
    %v473 = vadd.f32 %v449, %v459
    %v474 = vadd.f32 %v450, %v459
    %v475 = vadd.f32 %v451, %v459
    %v476 = vmax.f32 %v460, 0.0
    %v477 = vmax.f32 %v461, 0.0
    %v478 = vmax.f32 %v462, 0.0
    %v479 = vmax.f32 %v463, 0.0
    %v480 = vmax.f32 %v464, 0.0
    %v481 = vmax.f32 %v465, 0.0
    %v482 = vmax.f32 %v466, 0.0
    %v483 = vmax.f32 %v467, 0.0
    %v484 = vmax.f32 %v468, 0.0
    %v485 = vmax.f32 %v469, 0.0
    %v486 = vmax.f32 %v470, 0.0
    %v487 = vmax.f32 %v471, 0.0
    %v488 = vmax.f32 %v472, 0.0
    %v489 = vmax.f32 %v473, 0.0
    %v490 = vmax.f32 %v474, 0.0
    %v491 = vmax.f32 %v475, 0.0
    %v492 = vadd.f32 %v284, %v476
    %v493 = vadd.f32 %v285, %v477
    %v494 = vadd.f32 %v286, %v478
    %v495 = vadd.f32 %v287, %v479
    %v496 = vadd.f32 %v288, %v480
    %v497 = vadd.f32 %v289, %v481
    %v498 = vadd.f32 %v290, %v482
    %v499 = vadd.f32 %v291, %v483
    %v500 = vadd.f32 %v292, %v484
    %v501 = vadd.f32 %v293, %v485
    %v502 = vadd.f32 %v294, %v486
    %v503 = vadd.f32 %v295, %v487
    %v504 = vadd.f32 %v296, %v488
    %v505 = vadd.f32 %v297, %v489
    %v506 = vadd.f32 %v298, %v490
    %v507 = vadd.f32 %v299, %v491
    %vm508 = vcmask 64512
    %509 = vst.msk [vmem:[%s5] sm:$0xff] %vm508, %v492
    %510 = vst.msk [vmem:[%s5 + $0x8] sm:$0xff] %vm508, %v493
    %511 = vst.msk [vmem:[%s5 + $0x10] sm:$0xff] %vm508, %v494
    %512 = vst.msk [vmem:[%s5 + $0x18] sm:$0xff] %vm508, %v495
    %513 = vst.msk [vmem:[%s5 + $0x20] sm:$0xff] %vm508, %v496
    %514 = vst.msk [vmem:[%s5 + $0x28] sm:$0xff] %vm508, %v497
    %515 = vst.msk [vmem:[%s5 + $0x30] sm:$0xff] %vm508, %v498
    %516 = vst.msk [vmem:[%s5 + $0x38] sm:$0xff] %vm508, %v499
    %517 = vst.msk [vmem:[%s5 + $0x40] sm:$0xff] %vm508, %v500
    %518 = vst.msk [vmem:[%s5 + $0x48] sm:$0xff] %vm508, %v501
    %519 = vst.msk [vmem:[%s5 + $0x50] sm:$0xff] %vm508, %v502
    %520 = vst.msk [vmem:[%s5 + $0x58] sm:$0xff] %vm508, %v503
    %521 = vst.msk [vmem:[%s5 + $0x60] sm:$0xff] %vm508, %v504
    %522 = vst.msk [vmem:[%s5 + $0x68] sm:$0xff] %vm508, %v505
    %523 = vst.msk [vmem:[%s5 + $0x70] sm:$0xff] %vm508, %v506
    %524 = vst.msk [vmem:[%s5 + $0x78] sm:$0xff] %vm508, %v507
    %v525 = vsel %vm508, %v492, -inf
    %v526 = vsel %vm508, %v493, -inf
    %v527 = vsel %vm508, %v494, -inf
    %v528 = vmax.f32 %v525, %v527
    %v529 = vsel %vm508, %v495, -inf
    %v530 = vmax.f32 %v526, %v529
    %v531 = vsel %vm508, %v496, -inf
    %v532 = vmax.f32 %v528, %v531
    %v533 = vsel %vm508, %v497, -inf
    %v534 = vmax.f32 %v530, %v533
    %v535 = vsel %vm508, %v498, -inf
    %v536 = vmax.f32 %v532, %v535
    %v537 = vsel %vm508, %v499, -inf
    %v538 = vmax.f32 %v534, %v537
    %v539 = vmax.f32 %v536, %v538
    %v540 = vrot.slane %v539, 4
    %v541 = vmax.f32 %v539, %v540
    %v542 = vrot.slane %v541, 2
    %v543 = vmax.f32 %v541, %v542
    %v544 = vrot.slane %v543, 1
    %v545 = vmax.f32 %v543, %v544
    %v546 = vsel %vm508, %v500, -inf
    %v547 = vsel %vm508, %v501, -inf
    %v548 = vsel %vm508, %v502, -inf
    %v549 = vmax.f32 %v546, %v548
    %v550 = vsel %vm508, %v503, -inf
    %v551 = vmax.f32 %v547, %v550
    %v552 = vsel %vm508, %v504, -inf
    %v553 = vmax.f32 %v549, %v552
    %v554 = vsel %vm508, %v505, -inf
    %v555 = vmax.f32 %v551, %v554
    %v556 = vsel %vm508, %v506, -inf
    %v557 = vmax.f32 %v553, %v556
    %v558 = vsel %vm508, %v507, -inf
    %v559 = vmax.f32 %v555, %v558
    %v560 = vmax.f32 %v557, %v559
    %v561 = vrot.slane %v560, 4
    %v562 = vmax.f32 %v560, %v561
    %v563 = vrot.slane %v562, 2
    %v564 = vmax.f32 %v562, %v563
    %v565 = vrot.slane %v564, 1
    %v566 = vmax.f32 %v564, %v565
    %v567 = vld [vmem:[%s3] sm:$0xff]
    %v568 = vld [vmem:[%s4] sm:$0x1]
    %v570 = vlaneseq
    %v571 = vshrl.u32 %v570, 7
    %v572 = vsub.s32 0, %v571
    %v573 = vrot.slane %v568, %v572
    %vm577 = vcmask 1041409
    %v578 = vsel %vm577, %v566, %v545
    %v579 = vsel %vm508, %v578, 0
    %581 = vmatprep.subr.mxu0 0.0
    %582 = vmatpush1.msra.mxu0 0.0
    %583 = vmatprep.subr.mxu0 0.0
    %584 = vmatpush1.msra.mxu0 0.0
    %585 = vmatprep.subr.mxu0 0.0
    %586 = vmatpush1.msra.mxu0 0.0
    %587 = vmatprep.subr.mxu0 0.0
    %588 = vmatpush1.msra.mxu0 0.0
    %589 = vmatprep.subr.mxu0 0.0
    %590 = vmatpush1.msra.mxu0 0.0
    %591 = vmatprep.subr.mxu0 0.0
    %592 = vmatpush1.msra.mxu0 0.0
    %593 = vmatprep.subr.mxu0 0.0
    %594 = vmatpush1.msra.mxu0 0.0
    %595 = vmatprep.subr.mxu0 0.0
    %596 = vmatpush1.msra.mxu0 0.0
    %597 = vmatprep.subr.mxu0 0.0
    %598 = vmatpush1.msra.mxu0 0.0
    %599 = vmatprep.subr.mxu0 0.0
    %600 = vmatpush1.msra.mxu0 0.0
    %601 = vmatprep.subr.mxu0 0.0
    %602 = vmatpush1.msra.mxu0 0.0
    %603 = vmatprep.subr.mxu0 0.0
    %604 = vmatpush1.msra.mxu0 0.0
    %605 = vmatprep.subr.mxu0 0.0
    %606 = vmatpush1.msra.mxu0 0.0
    %607 = vmatprep.subr.mxu0 0.0
    %608 = vmatpush1.msra.mxu0 0.0
    %609 = vmatprep.subr.mxu0 0.0
    %610 = vmatpush1.msra.mxu0 0.0
    %611 = vmatprep.subr.mxu0 0.0
    %612 = vmatpush1.msra.mxu0 %v567
    %613 = vmatprep.subr.mxu0 0.0
    %614 = vmatpush2.msra.mxu0 0.0
    %615 = vmatprep.subr.mxu0 0.0
    %616 = vmatpush2.msra.mxu0 0.0
    %617 = vmatprep.subr.mxu0 0.0
    %618 = vmatpush2.msra.mxu0 0.0
    %619 = vmatprep.subr.mxu0 0.0
    %620 = vmatpush2.msra.mxu0 0.0
    %621 = vmatprep.subr.mxu0 0.0
    %622 = vmatpush2.msra.mxu0 0.0
    %623 = vmatprep.subr.mxu0 0.0
    %624 = vmatpush2.msra.mxu0 0.0
    %625 = vmatprep.subr.mxu0 0.0
    %626 = vmatpush2.msra.mxu0 0.0
    %627 = vmatprep.subr.mxu0 0.0
    %628 = vmatpush2.msra.mxu0 0.0
    %629 = vmatprep.subr.mxu0 0.0
    %630 = vmatpush2.msra.mxu0 0.0
    %631 = vmatprep.subr.mxu0 0.0
    %632 = vmatpush2.msra.mxu0 0.0
    %633 = vmatprep.subr.mxu0 0.0
    %634 = vmatpush2.msra.mxu0 0.0
    %635 = vmatprep.subr.mxu0 0.0
    %636 = vmatpush2.msra.mxu0 0.0
    %637 = vmatprep.subr.mxu0 0.0
    %638 = vmatpush2.msra.mxu0 0.0
    %639 = vmatprep.subr.mxu0 0.0
    %640 = vmatpush2.msra.mxu0 0.0
    %641 = vmatprep.subr.mxu0 0.0
    %642 = vmatpush2.msra.mxu0 0.0
    %643 = vmatprep.subr.mxu0 0.0
    %644 = vmatpush2.msra.mxu0 0.0
    %645 = vmatprep.mubr.f32.mxu0 0.0
    %646 = vmatmul.mubr.f32.gmra.mxu0 %v579
    %v647 = vpop.f32.mrf.mxu0
    %v648 = vadd.f32 %v573, %v647
    %v649 = vpop.f32.mrf.mxu0
    %650 = vdwg.mxu0
    %vm651 = vcmask 58368
    %652 = vst.msk [vmem:[#allocation2] sm:$0x3] %vm651, %v648
    // Predicated region
    $region22: #{tpu_custom_call.1} parent=1 // pred_check
      _
    $region23: #{tpu_custom_call.1} parent=1 // pred_check_branch
      %654 = sbr.rel (0) target = $region25
    $region24: #{tpu_custom_call.1} parent=1 // pred_region
      _
    $region25: #{tpu_custom_call.1} parent=1 // pred_fallthru
      _
    // Predicated region
    $region26: #{tpu_custom_call.1} parent=1 // pred_check
      _
    $region27: #{tpu_custom_call.1} parent=1 // pred_check_branch
      %656 = sbr.rel (0) target = $region29
    $region28: #{tpu_custom_call.1} parent=1 // pred_region
      %s658 = ssub.s32 32, 32
      %659 = vsyncadd [#allocation3], %s658
      %s661 = sshll.u32 [#allocation2], 4
      %s662 = int_to_ptr.vmem [resolvable:$true] %s661
      %664 = dma.vmem_to_hbm [thread:$0]  %s662, 32, %s6, [#allocation3]
    $region29: #{tpu_custom_call.1} parent=1 // pred_fallthru
      _
    // Predicated region
    $region30: #{tpu_custom_call.1} parent=1 // pred_check
      _
    $region31: #{tpu_custom_call.1} parent=1 // pred_check_branch
      %666 = sbr.rel (0) target = $region33
    $region32: #{tpu_custom_call.1} parent=1 // pred_region
      _
    $region33: #{tpu_custom_call.1} parent=1 // pred_fallthru
      _
    // Predicated region
    $region34: #{tpu_custom_call.1} parent=1 // pred_check
      _
    $region35: #{tpu_custom_call.1} parent=1 // pred_check_branch
      %668 = sbr.rel (0) target = $region37
    $region36: #{tpu_custom_call.1} parent=1 // pred_region
      %669 = dma.done [#allocation3], 32
    $region37: #{tpu_custom_call.1} parent=1 // pred_fallthru
      _
    %670 = vsyncpa [#allocation3], 1

</llo_original>
